<compile_context>
chip_gen: v5e
topology: v5e:2x2
jax: 0.10.0
libtpu: 0.0.40
codegen_flags: <defaults>
</compile_context>

<pallas_src>
import math

import jax
import jax.numpy as jnp
from jax import lax
from jax.experimental import pallas as pl
from jax.experimental.pallas import tpu as pltpu

EMBED_DIM = 32
NUM_HEADS = 4
HEAD_DIM = EMBED_DIM // NUM_HEADS
HIDDEN_DIM = EMBED_DIM * 4
LN_EPS = 1e-5

# Set True on v6e/v7x at larger model sizes (bf16 matmul operands, f32 acc).
USE_BF16_DOTS = False


def _layernorm(x, gamma, beta):
    # x: (T, D), gamma/beta: (1, D) -- all f32
    mean = jnp.mean(x, axis=-1, keepdims=True)
    var = jnp.mean((x - mean) ** 2, axis=-1, keepdims=True)
    inv = lax.rsqrt(var + LN_EPS)
    return (x - mean) * inv * gamma + beta


def _dot(a, b):
    if USE_BF16_DOTS:
        a, b = a.astype(jnp.bfloat16), b.astype(jnp.bfloat16)
    return jnp.dot(a, b, preferred_element_type=jnp.float32)


def _bmm(eq, a, b):
    if USE_BF16_DOTS:
        a, b = a.astype(jnp.bfloat16), b.astype(jnp.bfloat16)
    return jnp.einsum(eq, a, b, preferred_element_type=jnp.float32)


def transformer_block_kernel(
    x_ref,        # (T, D)      -- batch dim squeezed by BlockSpec
    wqkv_ref,     # (D, 3D)     -- 1/sqrt(hd) folded into Q columns
    bqkv_ref,     # (1, 3D)
    wout_ref,     # (D, D)
    w1_ref,       # (D, HID)
    b1_ref,       # (1, HID)
    w2_ref,       # (HID, D)
    vecs_ref,     # (8, D) slab: [ln1_g, ln1_b, ln2_g, ln2_b, bout, b2, pad, pad]
    out_ref,      # (T, D)
):
    D, H, hd = EMBED_DIM, NUM_HEADS, HEAD_DIM
    T = x_ref.shape[0]

    x = x_ref[...]                                            # (T, D)
    vecs = vecs_ref[...]                                      # (8, D)
    ln1_g, ln1_b = vecs[0:1, :], vecs[1:2, :]
    ln2_g, ln2_b = vecs[2:3, :], vecs[3:4, :]
    bout, b2 = vecs[4:5, :], vecs[5:6, :]

    # ---- ln1 + fused QKV projection (one lane-dense matmul) ----
    h = _layernorm(x, ln1_g, ln1_b)
    qkv = _dot(h, wqkv_ref[...]) + bqkv_ref[...]              # (T, 3D)

    # (T, 3D) -> (3H, T, hd): one reshape + one transpose, then static
    # major-dim slices to get head-major q/k/v.
    qkv_h = jnp.transpose(qkv.reshape(T, 3 * H, hd), (1, 0, 2))
    q = qkv_h[0 * H:1 * H]                                    # (H, T, hd), pre-scaled
    k = qkv_h[1 * H:2 * H]
    v = qkv_h[2 * H:3 * H]

    # ---- attention: per-batch (no mask needed), softmax in f32 ----
    s = _bmm("hqd,hkd->hqk", q, k)                            # (H, T, T)
    s = s - jnp.max(s, axis=-1, keepdims=True)
    p = jnp.exp(s)
    denom = jnp.sum(p, axis=-1, keepdims=True)                # (H, T, 1)
    o = _bmm("hqk,hkd->hqd", p, v)                            # (H, T, hd)
    o = o / denom                                             # exact reciprocal

    # ---- output projection: (T, H*hd) x (D, D) in one pass ----
    o2 = jnp.transpose(o, (1, 0, 2)).reshape(T, D)            # (T, D), head-major cols
    attn = _dot(o2, wout_ref[...]) + bout                     # (T, D)
    x1 = x + attn                                             # residual (dropout = id)

    # ---- ln2 + FFN (dropouts = identity) ----
    h2 = _layernorm(x1, ln2_g, ln2_b)
    ff = _dot(h2, w1_ref[...]) + b1_ref[...]
    ff = jnp.maximum(ff, 0.0)
    ff = _dot(ff, w2_ref[...]) + b2

    out_ref[...] = (x1 + ff).astype(out_ref.dtype)


def _prep_params(params):
    """Host-side, one-time parameter transforms (not per-call activation work)."""
    D = EMBED_DIM
    scale = 1.0 / math.sqrt(HEAD_DIM)
    # Fold the softmax scale into the Q projection columns (0:D) of the fused
    # QKV weight and bias.
    col_scale = jnp.concatenate(
        [jnp.full((D,), scale, jnp.float32), jnp.ones((2 * D,), jnp.float32)])
    wqkv_s = params["wqkv"] * col_scale[None, :]
    bqkv_s = params["bqkv"] * col_scale[None, :]
    # Pack the tiny (1, D) vectors into one (8, D) slab (one DMA, one VMEM tile).
    vecs = jnp.concatenate(
        [params["ln1_g"], params["ln1_b"],
         params["ln2_g"], params["ln2_b"],
         params["bout"], params["b2"],
         jnp.zeros((2, D), jnp.float32)], axis=0)
    return wqkv_s, bqkv_s, vecs


def transformer_block(x, params):
    """x: (B, T, D) float32.  params: dict of weights in (in, out) layout."""
    B, T, D = x.shape
    assert D == EMBED_DIM
    wqkv_s, bqkv_s, vecs = _prep_params(params)

    def const2(arr):  # full-array block, constant index map (no re-DMA across steps)
        return pl.BlockSpec(arr.shape, lambda b: (0, 0))

    out = pl.pallas_call(
        transformer_block_kernel,
        out_shape=jax.ShapeDtypeStruct((B, T, D), x.dtype),
        grid=(B,),
        in_specs=[
            pl.BlockSpec((None, T, D), lambda b: (b, 0, 0)),   # x, batch squeezed
            const2(wqkv_s),
            const2(bqkv_s),
            const2(params["wout"]),
            const2(params["w1"]),
            const2(params["b1"]),
            const2(params["w2"]),
            const2(vecs),
        ],
        out_specs=pl.BlockSpec((None, T, D), lambda b: (b, 0, 0)),
        compiler_params=pltpu.CompilerParams(
            dimension_semantics=("parallel",)),
    )(x, wqkv_s, bqkv_s, params["wout"], params["w1"], params["b1"],
      params["w2"], vecs)
    return out


def init_params(key, D=EMBED_DIM, H=HIDDEN_DIM):
    """Deterministic synthetic parameters. Linear weights stored as (in, out)."""
    keys = jax.random.split(key, 4)

    def lin(k, fan_in, fan_out):
        kw, kb = jax.random.split(k)
        bound = 1.0 / math.sqrt(fan_in)
        w = jax.random.uniform(kw, (fan_in, fan_out), jnp.float32, -bound, bound)
        b = jax.random.uniform(kb, (1, fan_out), jnp.float32, -bound, bound)
        return w, b

    wqkv, bqkv = lin(keys[0], D, 3 * D)
    wout, bout = lin(keys[1], D, D)
    w1, b1 = lin(keys[2], D, H)
    w2, b2 = lin(keys[3], H, D)
    return {
        "ln1_g": jnp.ones((1, D), jnp.float32),
        "ln1_b": jnp.zeros((1, D), jnp.float32),
        "wqkv": wqkv, "bqkv": bqkv,
        "wout": wout, "bout": bout,
        "ln2_g": jnp.ones((1, D), jnp.float32),
        "ln2_b": jnp.zeros((1, D), jnp.float32),
        "w1": w1, "b1": b1,
        "w2": w2, "b2": b2,
    }


def reference_block(x, p):
    """Pure-JAX reference mirroring the PyTorch forward (eval mode)."""
    def ln(x, g, b):
        m = jnp.mean(x, -1, keepdims=True)
        v = jnp.mean((x - m) ** 2, -1, keepdims=True)
        return (x - m) * lax.rsqrt(v + LN_EPS) * g + b

    B, T, D = x.shape
    h = ln(x, p["ln1_g"], p["ln1_b"])
    qkv = h @ p["wqkv"] + p["bqkv"]
    qkv = qkv.reshape(B, T, 3, NUM_HEADS, HEAD_DIM).transpose(2, 0, 3, 1, 4)
    q, k, v = qkv[0], qkv[1], qkv[2]
    s = jnp.einsum("bhqd,bhkd->bhqk", q, k) / math.sqrt(HEAD_DIM)
    a = jax.nn.softmax(s, axis=-1)
    o = jnp.einsum("bhqk,bhkd->bhqd", a, v).transpose(0, 2, 1, 3).reshape(B, T, D)
    x1 = x + (o @ p["wout"] + p["bout"])
    h2 = ln(x1, p["ln2_g"], p["ln2_b"])
    ff = jnp.maximum(h2 @ p["w1"] + p["b1"], 0.0) @ p["w2"] + p["b2"]
    return x1 + ff


if __name__ == "__main__":
    key = jax.random.PRNGKey(0)
    kx, kp = jax.random.split(key)

    B, T, D = 2, 8, EMBED_DIM
    x = jax.random.normal(kx, (B, T, D), jnp.float32)
    params = init_params(kp)

    out = jax.block_until_ready(transformer_block(x, params))
    ref = reference_block(x, params)

    assert out.shape == (B, T, D)
    # Exact softmax normalization + f32 dots everywhere -> tight tolerance.
    assert jnp.allclose(out, ref, atol=1e-4, rtol=1e-4), (
        f"max abs diff {jnp.max(jnp.abs(out - ref))}")

    print("KERNEL_OK")
</pallas_src>

<mosaic_0001>
module attributes {stable_mosaic.version = 11 : i64} {
  func.func @transformer_block_kernel(%arg0: i32, %arg1: memref<1x8x32xf32, #tpu.memory_space<vmem>>, %arg2: memref<32x96xf32, #tpu.memory_space<vmem>>, %arg3: memref<1x96xf32, #tpu.memory_space<vmem>>, %arg4: memref<32x32xf32, #tpu.memory_space<vmem>>, %arg5: memref<32x128xf32, #tpu.memory_space<vmem>>, %arg6: memref<1x128xf32, #tpu.memory_space<vmem>>, %arg7: memref<128x32xf32, #tpu.memory_space<vmem>>, %arg8: memref<8x32xf32, #tpu.memory_space<vmem>>, %arg9: memref<1x8x32xf32, #tpu.memory_space<vmem>>) attributes {dimension_semantics = [#tpu.dimension_semantics<parallel>], iteration_bounds = array<i64: 2>, scalar_prefetch = 0 : i64, scratch_operands = 0 : i64, tpu.core_type = #tpu.core_type<tc>, window_params = [{transform_indices = @transform_0, window_bounds = array<i64: 1, 8, 32>}, {pipeline_mode = #tpu.pipeline_mode<synchronous>, transform_indices = @transform_1, window_bounds = array<i64: 32, 96>}, {pipeline_mode = #tpu.pipeline_mode<synchronous>, transform_indices = @transform_2, window_bounds = array<i64: 1, 96>}, {pipeline_mode = #tpu.pipeline_mode<synchronous>, transform_indices = @transform_3, window_bounds = array<i64: 32, 32>}, {pipeline_mode = #tpu.pipeline_mode<synchronous>, transform_indices = @transform_4, window_bounds = array<i64: 32, 128>}, {pipeline_mode = #tpu.pipeline_mode<synchronous>, transform_indices = @transform_5, window_bounds = array<i64: 1, 128>}, {pipeline_mode = #tpu.pipeline_mode<synchronous>, transform_indices = @transform_6, window_bounds = array<i64: 128, 32>}, {pipeline_mode = #tpu.pipeline_mode<synchronous>, transform_indices = @transform_7, window_bounds = array<i64: 8, 32>}, {transform_indices = @transform_8, window_bounds = array<i64: 1, 8, 32>}]} {
    %c0 = arith.constant 0 : index
    %c0_0 = arith.constant 0 : index
    %c0_1 = arith.constant 0 : index
    %0 = vector.load %arg1[%c0, %c0_0, %c0_1] : memref<1x8x32xf32, #tpu.memory_space<vmem>>, vector<1x8x32xf32>
    %1 = vector.shape_cast %0 : vector<1x8x32xf32> to vector<8x32xf32>
    %c0_2 = arith.constant 0 : index
    %c0_3 = arith.constant 0 : index
    %2 = vector.load %arg8[%c0_2, %c0_3] : memref<8x32xf32, #tpu.memory_space<vmem>>, vector<8x32xf32>
    %3 = vector.extract_strided_slice %2 {offsets = [0, 0], sizes = [1, 32], strides = [1, 1]} : vector<8x32xf32> to vector<1x32xf32>
    %4 = vector.extract_strided_slice %2 {offsets = [1, 0], sizes = [1, 32], strides = [1, 1]} : vector<8x32xf32> to vector<1x32xf32>
    %5 = vector.extract_strided_slice %2 {offsets = [2, 0], sizes = [1, 32], strides = [1, 1]} : vector<8x32xf32> to vector<1x32xf32>
    %6 = vector.extract_strided_slice %2 {offsets = [3, 0], sizes = [1, 32], strides = [1, 1]} : vector<8x32xf32> to vector<1x32xf32>
    %7 = vector.extract_strided_slice %2 {offsets = [4, 0], sizes = [1, 32], strides = [1, 1]} : vector<8x32xf32> to vector<1x32xf32>
    %8 = vector.extract_strided_slice %2 {offsets = [5, 0], sizes = [1, 32], strides = [1, 1]} : vector<8x32xf32> to vector<1x32xf32>
    %cst = arith.constant dense<0.000000e+00> : vector<8xf32>
    %9 = vector.multi_reduction <add>, %1, %cst [1] : vector<8x32xf32> to vector<8xf32>
    %10 = vector.shape_cast %9 : vector<8xf32> to vector<8x1xf32>
    %cst_4 = arith.constant 3.200000e+01 : f32
    %11 = vector.broadcast %cst_4 : f32 to vector<8x1xf32>
    %12 = arith.divf %10, %11 : vector<8x1xf32>
    %13 = vector.broadcast %12 : vector<8x1xf32> to vector<8x32xf32>
    %14 = arith.subf %1, %13 : vector<8x32xf32>
    %15 = arith.mulf %14, %14 : vector<8x32xf32>
    %cst_5 = arith.constant dense<0.000000e+00> : vector<8xf32>
    %16 = vector.multi_reduction <add>, %15, %cst_5 [1] : vector<8x32xf32> to vector<8xf32>
    %17 = vector.shape_cast %16 : vector<8xf32> to vector<8x1xf32>
    %cst_6 = arith.constant 3.200000e+01 : f32
    %18 = vector.broadcast %cst_6 : f32 to vector<8x1xf32>
    %19 = arith.divf %17, %18 : vector<8x1xf32>
    %cst_7 = arith.constant 9.99999974E-6 : f32
    %20 = vector.broadcast %cst_7 : f32 to vector<8x1xf32>
    %21 = arith.addf %19, %20 : vector<8x1xf32>
    %22 = math.rsqrt %21 : vector<8x1xf32>
    %23 = vector.broadcast %12 : vector<8x1xf32> to vector<8x32xf32>
    %24 = arith.subf %1, %23 : vector<8x32xf32>
    %25 = vector.broadcast %22 : vector<8x1xf32> to vector<8x32xf32>
    %26 = arith.mulf %24, %25 : vector<8x32xf32>
    %27 = vector.broadcast %3 : vector<1x32xf32> to vector<8x32xf32>
    %28 = arith.mulf %26, %27 : vector<8x32xf32>
    %29 = vector.broadcast %4 : vector<1x32xf32> to vector<8x32xf32>
    %30 = arith.addf %28, %29 : vector<8x32xf32>
    %c0_8 = arith.constant 0 : index
    %c0_9 = arith.constant 0 : index
    %31 = vector.load %arg2[%c0_8, %c0_9] : memref<32x96xf32, #tpu.memory_space<vmem>>, vector<32x96xf32>
    %cst_10 = arith.constant dense<0.000000e+00> : vector<8x96xf32>
    %32 = tpu.matmul %30, %31, %cst_10 {dimension_numbers = #tpu.dot_dimension_numbers<[1], [0], [0], [1], [0, 0, 1, 1], [], []>} : vector<8x32xf32>, vector<32x96xf32>, vector<8x96xf32> -> vector<8x96xf32>
    %c0_11 = arith.constant 0 : index
    %c0_12 = arith.constant 0 : index
    %33 = vector.load %arg3[%c0_11, %c0_12] : memref<1x96xf32, #tpu.memory_space<vmem>>, vector<1x96xf32>
    %34 = vector.broadcast %33 : vector<1x96xf32> to vector<8x96xf32>
    %35 = arith.addf %32, %34 : vector<8x96xf32>
    %36 = vector.shape_cast %35 : vector<8x96xf32> to vector<8x12x8xf32>
    %37 = tpu.transpose %36, [1, 0, 2] : vector<8x12x8xf32> -> vector<12x8x8xf32>
    %38 = vector.extract_strided_slice %37 {offsets = [0, 0, 0], sizes = [4, 8, 8], strides = [1, 1, 1]} : vector<12x8x8xf32> to vector<4x8x8xf32>
    %39 = vector.extract_strided_slice %37 {offsets = [4, 0, 0], sizes = [4, 8, 8], strides = [1, 1, 1]} : vector<12x8x8xf32> to vector<4x8x8xf32>
    %40 = vector.extract_strided_slice %37 {offsets = [8, 0, 0], sizes = [4, 8, 8], strides = [1, 1, 1]} : vector<12x8x8xf32> to vector<4x8x8xf32>
    "tpu.trace_start"() <{level = 10 : i32, message = "hqd,hkd->hqk"}> : () -> ()
    %cst_13 = arith.constant dense<0.000000e+00> : vector<4x8x8xf32>
    %41 = tpu.matmul %38, %39, %cst_13 {dimension_numbers = #tpu.dot_dimension_numbers<[2], [2], [1], [1], [0, 0, 0, 1, 1, 1], [0], [0]>} : vector<4x8x8xf32>, vector<4x8x8xf32>, vector<4x8x8xf32> -> vector<4x8x8xf32>
    "tpu.trace_stop"() : () -> ()
    %cst_14 = arith.constant dense<0xFF800000> : vector<4x8xf32>
    %42 = vector.multi_reduction <maximumf>, %41, %cst_14 [2] : vector<4x8x8xf32> to vector<4x8xf32>
    %43 = vector.shape_cast %42 : vector<4x8xf32> to vector<4x8x1xf32>
    %44 = vector.broadcast %43 : vector<4x8x1xf32> to vector<4x8x8xf32>
    %45 = arith.subf %41, %44 : vector<4x8x8xf32>
    %46 = math.exp %45 : vector<4x8x8xf32>
    %cst_15 = arith.constant dense<0.000000e+00> : vector<4x8xf32>
    %47 = vector.multi_reduction <add>, %46, %cst_15 [2] : vector<4x8x8xf32> to vector<4x8xf32>
    %48 = vector.shape_cast %47 : vector<4x8xf32> to vector<4x8x1xf32>
    "tpu.trace_start"() <{level = 10 : i32, message = "hqk,hkd->hqd"}> : () -> ()
    %cst_16 = arith.constant dense<0.000000e+00> : vector<4x8x8xf32>
    %49 = tpu.matmul %46, %40, %cst_16 {dimension_numbers = #tpu.dot_dimension_numbers<[2], [1], [1], [2], [0, 0, 0, 1, 1, 2], [0], [0]>} : vector<4x8x8xf32>, vector<4x8x8xf32>, vector<4x8x8xf32> -> vector<4x8x8xf32>
    "tpu.trace_stop"() : () -> ()
    %50 = vector.broadcast %48 : vector<4x8x1xf32> to vector<4x8x8xf32>
    %51 = arith.divf %49, %50 : vector<4x8x8xf32>
    %52 = tpu.transpose %51, [1, 0, 2] : vector<4x8x8xf32> -> vector<8x4x8xf32>
    %53 = vector.shape_cast %52 : vector<8x4x8xf32> to vector<8x32xf32>
    %c0_17 = arith.constant 0 : index
    %c0_18 = arith.constant 0 : index
    %54 = vector.load %arg4[%c0_17, %c0_18] : memref<32x32xf32, #tpu.memory_space<vmem>>, vector<32x32xf32>
    %cst_19 = arith.constant dense<0.000000e+00> : vector<8x32xf32>
    %55 = tpu.matmul %53, %54, %cst_19 {dimension_numbers = #tpu.dot_dimension_numbers<[1], [0], [0], [1], [0, 0, 1, 1], [], []>} : vector<8x32xf32>, vector<32x32xf32>, vector<8x32xf32> -> vector<8x32xf32>
    %56 = vector.broadcast %7 : vector<1x32xf32> to vector<8x32xf32>
    %57 = arith.addf %55, %56 : vector<8x32xf32>
    %58 = arith.addf %1, %57 : vector<8x32xf32>
    %cst_20 = arith.constant dense<0.000000e+00> : vector<8xf32>
    %59 = vector.multi_reduction <add>, %58, %cst_20 [1] : vector<8x32xf32> to vector<8xf32>
    %60 = vector.shape_cast %59 : vector<8xf32> to vector<8x1xf32>
    %cst_21 = arith.constant 3.200000e+01 : f32
    %61 = vector.broadcast %cst_21 : f32 to vector<8x1xf32>
    %62 = arith.divf %60, %61 : vector<8x1xf32>
    %63 = vector.broadcast %62 : vector<8x1xf32> to vector<8x32xf32>
    %64 = arith.subf %58, %63 : vector<8x32xf32>
    %65 = arith.mulf %64, %64 : vector<8x32xf32>
    %cst_22 = arith.constant dense<0.000000e+00> : vector<8xf32>
    %66 = vector.multi_reduction <add>, %65, %cst_22 [1] : vector<8x32xf32> to vector<8xf32>
    %67 = vector.shape_cast %66 : vector<8xf32> to vector<8x1xf32>
    %cst_23 = arith.constant 3.200000e+01 : f32
    %68 = vector.broadcast %cst_23 : f32 to vector<8x1xf32>
    %69 = arith.divf %67, %68 : vector<8x1xf32>
    %cst_24 = arith.constant 9.99999974E-6 : f32
    %70 = vector.broadcast %cst_24 : f32 to vector<8x1xf32>
    %71 = arith.addf %69, %70 : vector<8x1xf32>
    %72 = math.rsqrt %71 : vector<8x1xf32>
    %73 = vector.broadcast %62 : vector<8x1xf32> to vector<8x32xf32>
    %74 = arith.subf %58, %73 : vector<8x32xf32>
    %75 = vector.broadcast %72 : vector<8x1xf32> to vector<8x32xf32>
    %76 = arith.mulf %74, %75 : vector<8x32xf32>
    %77 = vector.broadcast %5 : vector<1x32xf32> to vector<8x32xf32>
    %78 = arith.mulf %76, %77 : vector<8x32xf32>
    %79 = vector.broadcast %6 : vector<1x32xf32> to vector<8x32xf32>
    %80 = arith.addf %78, %79 : vector<8x32xf32>
    %c0_25 = arith.constant 0 : index
    %c0_26 = arith.constant 0 : index
    %81 = vector.load %arg5[%c0_25, %c0_26] : memref<32x128xf32, #tpu.memory_space<vmem>>, vector<32x128xf32>
    %cst_27 = arith.constant dense<0.000000e+00> : vector<8x128xf32>
    %82 = tpu.matmul %80, %81, %cst_27 {dimension_numbers = #tpu.dot_dimension_numbers<[1], [0], [0], [1], [0, 0, 1, 1], [], []>} : vector<8x32xf32>, vector<32x128xf32>, vector<8x128xf32> -> vector<8x128xf32>
    %c0_28 = arith.constant 0 : index
    %c0_29 = arith.constant 0 : index
    %83 = vector.load %arg6[%c0_28, %c0_29] : memref<1x128xf32, #tpu.memory_space<vmem>>, vector<1x128xf32>
    %84 = vector.broadcast %83 : vector<1x128xf32> to vector<8x128xf32>
    %85 = arith.addf %82, %84 : vector<8x128xf32>
    %cst_30 = arith.constant 0.000000e+00 : f32
    %86 = vector.broadcast %cst_30 : f32 to vector<8x128xf32>
    %87 = arith.maximumf %85, %86 : vector<8x128xf32>
    %c0_31 = arith.constant 0 : index
    %c0_32 = arith.constant 0 : index
    %88 = vector.load %arg7[%c0_31, %c0_32] : memref<128x32xf32, #tpu.memory_space<vmem>>, vector<128x32xf32>
    %cst_33 = arith.constant dense<0.000000e+00> : vector<8x32xf32>
    %89 = tpu.matmul %87, %88, %cst_33 {dimension_numbers = #tpu.dot_dimension_numbers<[1], [0], [0], [1], [0, 0, 1, 1], [], []>} : vector<8x128xf32>, vector<128x32xf32>, vector<8x32xf32> -> vector<8x32xf32>
    %90 = vector.broadcast %8 : vector<1x32xf32> to vector<8x32xf32>
    %91 = arith.addf %89, %90 : vector<8x32xf32>
    %92 = arith.addf %58, %91 : vector<8x32xf32>
    %c0_34 = arith.constant 0 : index
    %c0_35 = arith.constant 0 : index
    %c0_36 = arith.constant 0 : index
    %93 = vector.load %arg9[%c0_34, %c0_35, %c0_36] : memref<1x8x32xf32, #tpu.memory_space<vmem>>, vector<1x8x32xf32>
    %94 = vector.shape_cast %93 : vector<1x8x32xf32> to vector<8x32xf32>
    %95 = vector.shape_cast %92 : vector<8x32xf32> to vector<1x8x32xf32>
    tpu.vector_store %arg9[%c0_34, %c0_35, %c0_36], %95 {strides = array<i32>} : memref<1x8x32xf32, #tpu.memory_space<vmem>>, vector<1x8x32xf32>,
    return
  }
  func.func @transform_0(%arg0: i32) -> (i32, i32, i32) {
    %c0_i32 = arith.constant 0 : i32
    %c0_i32_0 = arith.constant 0 : i32
    %c0_i32_1 = arith.constant 0 : i32
    return %arg0, %c0_i32, %c0_i32_0 : i32, i32, i32
  }
  func.func @transform_1(%arg0: i32) -> (i32, i32) {
    %c0_i32 = arith.constant 0 : i32
    %c0_i32_0 = arith.constant 0 : i32
    %c0_i32_1 = arith.constant 0 : i32
    return %c0_i32, %c0_i32_0 : i32, i32
  }
  func.func @transform_2(%arg0: i32) -> (i32, i32) {
    %c0_i32 = arith.constant 0 : i32
    %c0_i32_0 = arith.constant 0 : i32
    %c0_i32_1 = arith.constant 0 : i32
    return %c0_i32, %c0_i32_0 : i32, i32
  }
  func.func @transform_3(%arg0: i32) -> (i32, i32) {
    %c0_i32 = arith.constant 0 : i32
    %c0_i32_0 = arith.constant 0 : i32
    %c0_i32_1 = arith.constant 0 : i32
    return %c0_i32, %c0_i32_0 : i32, i32
  }
  func.func @transform_4(%arg0: i32) -> (i32, i32) {
    %c0_i32 = arith.constant 0 : i32
    %c0_i32_0 = arith.constant 0 : i32
    %c0_i32_1 = arith.constant 0 : i32
    return %c0_i32, %c0_i32_0 : i32, i32
  }
  func.func @transform_5(%arg0: i32) -> (i32, i32) {
    %c0_i32 = arith.constant 0 : i32
    %c0_i32_0 = arith.constant 0 : i32
    %c0_i32_1 = arith.constant 0 : i32
    return %c0_i32, %c0_i32_0 : i32, i32
  }
  func.func @transform_6(%arg0: i32) -> (i32, i32) {
    %c0_i32 = arith.constant 0 : i32
    %c0_i32_0 = arith.constant 0 : i32
    %c0_i32_1 = arith.constant 0 : i32
    return %c0_i32, %c0_i32_0 : i32, i32
  }
  func.func @transform_7(%arg0: i32) -> (i32, i32) {
    %c0_i32 = arith.constant 0 : i32
    %c0_i32_0 = arith.constant 0 : i32
    %c0_i32_1 = arith.constant 0 : i32
    return %c0_i32, %c0_i32_0 : i32, i32
  }
  func.func @transform_8(%arg0: i32) -> (i32, i32, i32) {
    %c0_i32 = arith.constant 0 : i32
    %c0_i32_0 = arith.constant 0 : i32
    %c0_i32_1 = arith.constant 0 : i32
    return %arg0, %c0_i32, %c0_i32_0 : i32, i32, i32
  }
}

</mosaic_0001>

<llo_original>
// kernel: tpu_custom_call.1
$region0: #{tpu_custom_call.1}
  #allocation0 [shape = 'u32[]', space=smem, size = 0x4, offset = 0x4, fixed_abs, tag = 'smem constant byte address 0x4 - core index']
  #allocation1 [shape = 'u32[72,128]{1,0:T(1,128)}', space=vmem, size = 0x9000, scoped, tag = 'internal scratch']
  %s0 = inlined_call_operand.vmem [shape: f32[2,8,32], index: 0, kind: input, shape index: {}]
  %s1 = inlined_call_operand.vmem [shape: f32[32,96], index: 1, kind: input, shape index: {}]
  %s2 = inlined_call_operand.vmem [shape: f32[1,96], index: 2, kind: input, shape index: {}]
  %s3 = inlined_call_operand.vmem [shape: f32[32,32], index: 3, kind: input, shape index: {}]
  %s4 = inlined_call_operand.vmem [shape: f32[32,128], index: 4, kind: input, shape index: {}]
  %s5 = inlined_call_operand.vmem [shape: f32[1,128], index: 5, kind: input, shape index: {}]
  %s6 = inlined_call_operand.vmem [shape: f32[128,32], index: 6, kind: input, shape index: {}]
  %s7 = inlined_call_operand.vmem [shape: f32[8,32], index: 7, kind: input, shape index: {}]
  %s8 = inlined_call_operand.hbm [shape: f32[2,8,32], index: 8, kind: output, shape index: {}]
  %s9 = sld [smem:[#allocation0]]
  $region65: #{tpu_custom_call.1} parent=0
    _
  %s11 = ssub.s32 1, %s9
  %s12 = scalar_select 0, %s11, %s9
  $region1: #{tpu_custom_call.1} parent=0
    #allocation2 [shape = 'u8[8192]{0}', space=vmem, size = 0x2000, scoped, tag = 'output window, operand 0']
    #allocation3 [shape = 's32[2]{0}', space=sflag, size = 0x8, scoped, tag = 'scoped memory for tpu_custom_call.1']
    %13 = vsyncpa [#allocation3], 0
    %s14 = scalar_lea.sflag [#allocation3], 1
    %15 = vsyncpa %s14, 0
    loop: start=0, step=1, limit=4
    $region2: #{tpu_custom_call.1} parent=1 // loop_pre_header
      _
    $region3: #{tpu_custom_call.1} parent=1 // loop_header
      %s17 = sphi 0, %s21
      %p18 = scmp.ge.s32.totalorder %s17, 4
      %s27 = sphi 0, %s29
      %s30 = sphi 0, %s27
      %s31 = sphi 0, %s30
      %s47 = sphi 0, %s31
      %s51 = sphi 0, %s51
      %s53 = sphi 0, %s51
      %s54 = sphi 0, %s53
      %s68 = sphi 0, %s54
      %s72 = sphi 0, %s72
      %s74 = sphi 0, %s72
      %s75 = sphi 0, %s74
      %s89 = sphi 0, %s75
      %s93 = sphi 0, %s93
      %s95 = sphi 0, %s93
      %s96 = sphi 0, %s95
      %s110 = sphi 0, %s96
      %s114 = sphi 0, %s114
      %s116 = sphi 0, %s114
      %s117 = sphi 0, %s116
      %s131 = sphi 0, %s117
      %s135 = sphi 0, %s135
      %s137 = sphi 0, %s135
      %s138 = sphi 0, %s137
      %s152 = sphi 0, %s138
      %s156 = sphi 0, %s156
      %s158 = sphi 0, %s156
      %s159 = sphi 0, %s158
      %s173 = sphi 0, %s159
      %s177 = sphi 0, %s177
      %s179 = sphi 0, %s177
      %s180 = sphi 0, %s179
      %s194 = sphi 0, %s180
      %s200 = sphi 0, %s202
      %s203 = sphi 0, %s200
      %s204 = sphi 0, %s203
      %s220 = sphi 0, %s204
    $region4: #{tpu_custom_call.1} parent=1 // loop_header_branch
      %20 = sbr.rel (%p18) target = $region8
    $region5: #{tpu_custom_call.1} parent=1 // loop_body
      %s22 = ssub.s32 %s17, 1
      %s23 = ssub.s32 %s17, 2
      %s24 = sadd.s32 %s17, 1
      %s25 = ssub.s32 %s17, %s24
      %p26 = scmp.eq.s32.totalorder %s25, 0
      %s28 = sadd.s32 %s27, 1
      %s29 = scalar_select %p26, %s27, %s28
      %p32 = pneg %p26
      %p33 = scmp.eq.s32.totalorder %s17, 1
      %p34 = por %p32, %p33
      %p35 = scmp.ne.s32.totalorder %s27, %s30
      %p36 = scmp.eq.s32.totalorder %s17, 0
      %p37 = por %p35, %p36
      %p38 = scmp.ne.s32.totalorder %s27, %s30
      %p39 = scmp.eq.s32.totalorder %s22, 1
      %p40 = por %p38, %p39
      %p41 = scmp.ne.s32.totalorder %s30, %s31
      %p42 = scmp.eq.s32.totalorder %s22, 0
      %p43 = por %p41, %p42
      %p44 = scmp.ne.s32.totalorder %s30, %s31
      %p45 = scmp.eq.s32.totalorder %s23, 1
      %p46 = por %p44, %p45
      %p48 = scmp.ne.s32.totalorder %s31, %s47
      %p49 = scmp.eq.s32.totalorder %s23, 0
      %p50 = por %p48, %p49
      %s52 = sadd.s32 %s51, 1
      %p55 = scmp.eq.s32.totalorder %s17, 1
      %p56 = scmp.ne.s32.totalorder %s51, %s53
      %p57 = scmp.eq.s32.totalorder %s17, 0
      %p58 = por %p56, %p57
      %p59 = scmp.ne.s32.totalorder %s51, %s53
      %p60 = scmp.eq.s32.totalorder %s22, 1
      %p61 = por %p59, %p60
      %p62 = scmp.ne.s32.totalorder %s53, %s54
      %p63 = scmp.eq.s32.totalorder %s22, 0
      %p64 = por %p62, %p63
      %p65 = scmp.ne.s32.totalorder %s53, %s54
      %p66 = scmp.eq.s32.totalorder %s23, 1
      %p67 = por %p65, %p66
      %p69 = scmp.ne.s32.totalorder %s54, %s68
      %p70 = scmp.eq.s32.totalorder %s23, 0
      %p71 = por %p69, %p70
      %s73 = sadd.s32 %s72, 1
      %p76 = scmp.eq.s32.totalorder %s17, 1
      %p77 = scmp.ne.s32.totalorder %s72, %s74
      %p78 = scmp.eq.s32.totalorder %s17, 0
      %p79 = por %p77, %p78
      %p80 = scmp.ne.s32.totalorder %s72, %s74
      %p81 = scmp.eq.s32.totalorder %s22, 1
      %p82 = por %p80, %p81
      %p83 = scmp.ne.s32.totalorder %s74, %s75
      %p84 = scmp.eq.s32.totalorder %s22, 0
      %p85 = por %p83, %p84
      %p86 = scmp.ne.s32.totalorder %s74, %s75
      %p87 = scmp.eq.s32.totalorder %s23, 1
      %p88 = por %p86, %p87
      %p90 = scmp.ne.s32.totalorder %s75, %s89
      %p91 = scmp.eq.s32.totalorder %s23, 0
      %p92 = por %p90, %p91
      %s94 = sadd.s32 %s93, 1
      %p97 = scmp.eq.s32.totalorder %s17, 1
      %p98 = scmp.ne.s32.totalorder %s93, %s95
      %p99 = scmp.eq.s32.totalorder %s17, 0
      %p100 = por %p98, %p99
      %p101 = scmp.ne.s32.totalorder %s93, %s95
      %p102 = scmp.eq.s32.totalorder %s22, 1
      %p103 = por %p101, %p102
      %p104 = scmp.ne.s32.totalorder %s95, %s96
      %p105 = scmp.eq.s32.totalorder %s22, 0
      %p106 = por %p104, %p105
      %p107 = scmp.ne.s32.totalorder %s95, %s96
      %p108 = scmp.eq.s32.totalorder %s23, 1
      %p109 = por %p107, %p108
      %p111 = scmp.ne.s32.totalorder %s96, %s110
      %p112 = scmp.eq.s32.totalorder %s23, 0
      %p113 = por %p111, %p112
      %s115 = sadd.s32 %s114, 1
      %p118 = scmp.eq.s32.totalorder %s17, 1
      %p119 = scmp.ne.s32.totalorder %s114, %s116
      %p120 = scmp.eq.s32.totalorder %s17, 0
      %p121 = por %p119, %p120
      %p122 = scmp.ne.s32.totalorder %s114, %s116
      %p123 = scmp.eq.s32.totalorder %s22, 1
      %p124 = por %p122, %p123
      %p125 = scmp.ne.s32.totalorder %s116, %s117
      %p126 = scmp.eq.s32.totalorder %s22, 0
      %p127 = por %p125, %p126
      %p128 = scmp.ne.s32.totalorder %s116, %s117
      %p129 = scmp.eq.s32.totalorder %s23, 1
      %p130 = por %p128, %p129
      %p132 = scmp.ne.s32.totalorder %s117, %s131
      %p133 = scmp.eq.s32.totalorder %s23, 0
      %p134 = por %p132, %p133
      %s136 = sadd.s32 %s135, 1
      %p139 = scmp.eq.s32.totalorder %s17, 1
      %p140 = scmp.ne.s32.totalorder %s135, %s137
      %p141 = scmp.eq.s32.totalorder %s17, 0
      %p142 = por %p140, %p141
      %p143 = scmp.ne.s32.totalorder %s135, %s137
      %p144 = scmp.eq.s32.totalorder %s22, 1
      %p145 = por %p143, %p144
      %p146 = scmp.ne.s32.totalorder %s137, %s138
      %p147 = scmp.eq.s32.totalorder %s22, 0
      %p148 = por %p146, %p147
      %p149 = scmp.ne.s32.totalorder %s137, %s138
      %p150 = scmp.eq.s32.totalorder %s23, 1
      %p151 = por %p149, %p150
      %p153 = scmp.ne.s32.totalorder %s138, %s152
      %p154 = scmp.eq.s32.totalorder %s23, 0
      %p155 = por %p153, %p154
      %s157 = sadd.s32 %s156, 1
      %p160 = scmp.eq.s32.totalorder %s17, 1
      %p161 = scmp.ne.s32.totalorder %s156, %s158
      %p162 = scmp.eq.s32.totalorder %s17, 0
      %p163 = por %p161, %p162
      %p164 = scmp.ne.s32.totalorder %s156, %s158
      %p165 = scmp.eq.s32.totalorder %s22, 1
      %p166 = por %p164, %p165
      %p167 = scmp.ne.s32.totalorder %s158, %s159
      %p168 = scmp.eq.s32.totalorder %s22, 0
      %p169 = por %p167, %p168
      %p170 = scmp.ne.s32.totalorder %s158, %s159
      %p171 = scmp.eq.s32.totalorder %s23, 1
      %p172 = por %p170, %p171
      %p174 = scmp.ne.s32.totalorder %s159, %s173
      %p175 = scmp.eq.s32.totalorder %s23, 0
      %p176 = por %p174, %p175
      %s178 = sadd.s32 %s177, 1
      %p181 = scmp.eq.s32.totalorder %s17, 1
      %p182 = scmp.ne.s32.totalorder %s177, %s179
      %p183 = scmp.eq.s32.totalorder %s17, 0
      %p184 = por %p182, %p183
      %p185 = scmp.ne.s32.totalorder %s177, %s179
      %p186 = scmp.eq.s32.totalorder %s22, 1
      %p187 = por %p185, %p186
      %p188 = scmp.ne.s32.totalorder %s179, %s180
      %p189 = scmp.eq.s32.totalorder %s22, 0
      %p190 = por %p188, %p189
      %p191 = scmp.ne.s32.totalorder %s179, %s180
      %p192 = scmp.eq.s32.totalorder %s23, 1
      %p193 = por %p191, %p192
      %p195 = scmp.ne.s32.totalorder %s180, %s194
      %p196 = scmp.eq.s32.totalorder %s23, 0
      %p197 = por %p195, %p196
      %s198 = ssub.s32 %s17, %s24
      %p199 = scmp.eq.s32.totalorder %s198, 0
      %s201 = sadd.s32 %s200, 1
      %s202 = scalar_select %p199, %s200, %s201
      %p205 = pneg %p199
      %p206 = scmp.eq.s32.totalorder %s17, 1
      %p207 = por %p205, %p206
      %p208 = scmp.ne.s32.totalorder %s200, %s203
      %p209 = scmp.eq.s32.totalorder %s17, 0
      %p210 = por %p208, %p209
      %p211 = scmp.ne.s32.totalorder %s200, %s203
      %p212 = scmp.eq.s32.totalorder %s22, 1
      %p213 = por %p211, %p212
      %p214 = scmp.ne.s32.totalorder %s203, %s204
      %p215 = scmp.eq.s32.totalorder %s22, 0
      %p216 = por %p214, %p215
      %p217 = scmp.ne.s32.totalorder %s203, %s204
      %p218 = scmp.eq.s32.totalorder %s23, 1
      %p219 = por %p217, %p218
      %p221 = scmp.ne.s32.totalorder %s204, %s220
      %p222 = scmp.eq.s32.totalorder %s23, 0
      %p223 = por %p221, %p222
      %p224 = scmp.le.s32.totalorder 1, %s17
      %p225 = scmp.lt.s32.totalorder %s17, 3
      %p226 = pnand %p224, %p225
      %p227 = pneg %p226
      // Predicated region
      $region9: #{tpu_custom_call.1} parent=5 // pred_check
        _
      $region10: #{tpu_custom_call.1} parent=5 // pred_check_branch
        %229 = sbr.rel (%p226) target = $region12
      $region11: #{tpu_custom_call.1} parent=5 // pred_region
        %s230 = ssub.s32 %s17, 1
        // Predicated region
        $region13: #{tpu_custom_call.1} parent=11 // pred_check
          %p231 = pneg %p64
        $region14: #{tpu_custom_call.1} parent=11 // pred_check_branch
          %233 = sbr.rel (%p231) target = $region16
        $region15: #{tpu_custom_call.1} parent=11 // pred_region
          _
        $region16: #{tpu_custom_call.1} parent=11 // pred_fallthru
          _
        // Predicated region
        $region17: #{tpu_custom_call.1} parent=11 // pred_check
          %p234 = pneg %p85
        $region18: #{tpu_custom_call.1} parent=11 // pred_check_branch
          %236 = sbr.rel (%p234) target = $region20
        $region19: #{tpu_custom_call.1} parent=11 // pred_region
          _
        $region20: #{tpu_custom_call.1} parent=11 // pred_fallthru
          _
        // Predicated region
        $region21: #{tpu_custom_call.1} parent=11 // pred_check
          %p237 = pneg %p106
        $region22: #{tpu_custom_call.1} parent=11 // pred_check_branch
          %239 = sbr.rel (%p237) target = $region24
        $region23: #{tpu_custom_call.1} parent=11 // pred_region
          _
        $region24: #{tpu_custom_call.1} parent=11 // pred_fallthru
          _
        // Predicated region
        $region25: #{tpu_custom_call.1} parent=11 // pred_check
          %p240 = pneg %p127
        $region26: #{tpu_custom_call.1} parent=11 // pred_check_branch
          %242 = sbr.rel (%p240) target = $region28
        $region27: #{tpu_custom_call.1} parent=11 // pred_region
          _
        $region28: #{tpu_custom_call.1} parent=11 // pred_fallthru
          _
        // Predicated region
        $region29: #{tpu_custom_call.1} parent=11 // pred_check
          %p243 = pneg %p148
        $region30: #{tpu_custom_call.1} parent=11 // pred_check_branch
          %245 = sbr.rel (%p243) target = $region32
        $region31: #{tpu_custom_call.1} parent=11 // pred_region
          _
        $region32: #{tpu_custom_call.1} parent=11 // pred_fallthru
          _
        // Predicated region
        $region33: #{tpu_custom_call.1} parent=11 // pred_check
          %p246 = pneg %p169
        $region34: #{tpu_custom_call.1} parent=11 // pred_check_branch
          %248 = sbr.rel (%p246) target = $region36
        $region35: #{tpu_custom_call.1} parent=11 // pred_region
          _
        $region36: #{tpu_custom_call.1} parent=11 // pred_fallthru
          _
        // Predicated region
        $region37: #{tpu_custom_call.1} parent=11 // pred_check
          %p249 = pneg %p190
        $region38: #{tpu_custom_call.1} parent=11 // pred_check_branch
          %251 = sbr.rel (%p249) target = $region40
        $region39: #{tpu_custom_call.1} parent=11 // pred_region
          _
        $region40: #{tpu_custom_call.1} parent=11 // pred_fallthru
          _
      $region12: #{tpu_custom_call.1} parent=5 // pred_fallthru
        _
      %p252 = scmp.lt.s32.totalorder %s17, 2
      // Predicated region
      $region41: #{tpu_custom_call.1} parent=5 // pred_check
        %p253 = pneg %p252
      $region42: #{tpu_custom_call.1} parent=5 // pred_check_branch
        %255 = sbr.rel (%p253) target = $region44
      $region43: #{tpu_custom_call.1} parent=5 // pred_region
        // Predicated region
        $region45: #{tpu_custom_call.1} parent=43 // pred_check
          %p256 = pneg %p37
        $region46: #{tpu_custom_call.1} parent=43 // pred_check_branch
          %258 = sbr.rel (%p256) target = $region48
        $region47: #{tpu_custom_call.1} parent=43 // pred_region
          %p259 = scmp.lt.s32.totalorder %s17, 1
          %s260 = scalar_select %p259, %s17, 1
          %s261 = smul.addr %s260, 8
          %s262 = scalar_lea.vmem %s0, %s261
        $region48: #{tpu_custom_call.1} parent=43 // pred_fallthru
          _
      $region44: #{tpu_custom_call.1} parent=5 // pred_fallthru
        _
      %p263 = scmp.le.s32.totalorder 1, %s17
      %p264 = scmp.lt.s32.totalorder %s17, 3
      %p265 = pnand %p263, %p264
      %p266 = pneg %p265
      // Predicated region
      $region49: #{tpu_custom_call.1} parent=5 // pred_check
        _
      $region50: #{tpu_custom_call.1} parent=5 // pred_check_branch
        %268 = sbr.rel (%p265) target = $region52
      $region51: #{tpu_custom_call.1} parent=5 // pred_region
        %s269 = ssub.s32 %s17, 1
        %p270 = scmp.lt.s32.totalorder %s22, 1
        %s271 = scalar_select %p270, %s22, 1
        %s272 = smul.addr %s271, 8
        %s273 = scalar_lea.vmem %s0, %s272
        %p274 = pneg %p43
        %p275 = pneg %p40
        %p276 = pneg %p64
        %p277 = pneg %p61
        %p278 = pneg %p85
        %p279 = pneg %p82
        %p280 = pneg %p106
        %p281 = pneg %p103
        %p282 = pneg %p127
        %p283 = pneg %p124
        %p284 = pneg %p148
        %p285 = pneg %p145
        %p286 = pneg %p169
        %p287 = pneg %p166
        %p288 = pneg %p190
        %p289 = pneg %p187
        %p290 = pneg %p216
        %p291 = pneg %p213
        %s292 = sand.u32 %s203, 1
        %s293 = scalar_lea.sflag [#allocation3], %s292
        %s294 = sand.u32 %s203, 1
        %s295 = smul.addr %s294, 8
        %s296 = scalar_lea.vmem [#allocation2], %s295
        %p297 = scmp.lt.s32.totalorder %s22, 1
        %s298 = scalar_select %p297, %s22, 1
        %s299 = smul.addr %s298, 8
        %s300 = scalar_lea.vmem %s0, %s299
        %v301 = vld [vmem:[%s300] sm:$0xff]
        %v302 = vld [vmem:[%s7] sm:$0xff]
        %vm303 = vcmask 261120
        %v304 = vsel %vm303, %v301, 0.0
        %305 = vadd.xlane.f32.xlu0 %v304
        %v306 = vpop.xlane.xlu0 %305
        %v307 = vrcp.pop 32.0
        %v308 = vmul.f32 32.0, %v307
        %v309 = vsub.f32 1.0, %v308
        %v310 = vmul.f32 %v307, %v309
        %v311 = vadd.f32 %v307, %v310
        %vm312 = vweird.f32 %v307
        %v313 = vsel %vm312, %v307, %v311
        %v314 = vmul.f32 %v306, %v313
        %v315 = vsub.f32 %v301, %v314
        %v316 = vmul.f32 %v315, %v315
        %v317 = vsel %vm303, %v316, 0.0
        %318 = vadd.xlane.f32.xlu0 %v317
        %v319 = vpop.xlane.xlu0 %318
        %v320 = vmul.f32 %v319, %v313
        %v321 = vadd.f32 %v320, 1e-05
        %v322 = vrsqrt.pop %v321
        %v323 = vmul.f32 %v322, %v321
        %v324 = vmul.f32 %v323, %v322
        %v325 = vmul.f32 0.5, %v324
        %v326 = vsub.f32 1.5, %v325
        %v327 = vmul.f32 %v322, %v326
        %vm328 = vweird.f32 %v321
        %vm329 = vweird.f32 %v322
        %vm330 = vmor %vm328, %vm329
        %v331 = vsel %vm330, %v322, %v327
        %v332 = vmul.f32 %v315, %v331
        %v333 = vperm.slane %v302, 0
        %v334 = vmul.f32 %v332, %v333
        %v335 = vperm.slane %v302, 1
        %v336 = vadd.f32 %v334, %v335
        %v337 = vld [vmem:[%s1] sm:$0xff]
        %v338 = vld [vmem:[%s1 + $0x8] sm:$0xff]
        %v339 = vld [vmem:[%s1 + $0x10] sm:$0xff]
        %v340 = vld [vmem:[%s1 + $0x18] sm:$0xff]
        %v341 = vld [vmem:[%s2] sm:$0x1]
        %v343 = vperm.slane %v341, 0
        %v346 = vsel %vm303, %v336, 0
        %348 = vmatpush.msra.mxu0 0.0
        %349 = vmatpush.msra.mxu0 0.0
        %350 = vmatpush.msra.mxu0 0.0
        %351 = vmatpush.msra.mxu0 0.0
        %352 = vmatpush.msra.mxu0 0.0
        %353 = vmatpush.msra.mxu0 0.0
        %354 = vmatpush.msra.mxu0 0.0
        %355 = vmatpush.msra.mxu0 0.0
        %356 = vmatpush.msra.mxu0 0.0
        %357 = vmatpush.msra.mxu0 0.0
        %358 = vmatpush.msra.mxu0 0.0
        %359 = vmatpush.msra.mxu0 0.0
        %360 = vmatpush.msra.mxu0 %v340
        %361 = vmatpush.msra.mxu0 %v339
        %362 = vmatpush.msra.mxu0 %v338
        %363 = vmatpush.msra.mxu0 %v337
        %364 = vmatmul.f32.gmra.mxu0 %v346
        %v365 = vpop.f32.mrf.mxu0
        %v366 = vadd.f32 %v343, %v365
        %367 = vdwg.mxu0
        %369 = vrot.lane.b32.xlu0 %v366, 120
        %v370 = vpop.permute.xlu0 %369
        %372 = vrot.lane.b32.xlu0 %v366, 112
        %v373 = vpop.permute.xlu0 %372
        %375 = vrot.lane.b32.xlu0 %v366, 104
        %v376 = vpop.permute.xlu0 %375
        %378 = vrot.lane.b32.xlu0 %v366, 96
        %v379 = vpop.permute.xlu0 %378
        %381 = vrot.lane.b32.xlu0 %v366, 88
        %v382 = vpop.permute.xlu0 %381
        %384 = vrot.lane.b32.xlu0 %v366, 80
        %v385 = vpop.permute.xlu0 %384
        %387 = vrot.lane.b32.xlu0 %v366, 72
        %v388 = vpop.permute.xlu0 %387
        %390 = vrot.lane.b32.xlu0 %v366, 64
        %v391 = vpop.permute.xlu0 %390
        %393 = vrot.lane.b32.xlu0 %v366, 56
        %v394 = vpop.permute.xlu0 %393
        %396 = vrot.lane.b32.xlu0 %v366, 48
        %v397 = vpop.permute.xlu0 %396
        %399 = vrot.lane.b32.xlu0 %v366, 40
        %v400 = vpop.permute.xlu0 %399
        %v402 = vrot.slane %v373, 4
        %vm403 = vcmask 1047556
        %v404 = vsel %vm403, %v402, %v366
        %v405 = vrot.slane %v366, 4
        %v406 = vsel %vm403, %v373, %v405
        %v408 = vunpack.c.l.s4 1983009808
        %v409 = vunpack.c.0.s8 %v408
        %v410 = vperm.slane %v404, %v409
        %v412 = vunpack.c.l.s4 1983009808
        %v413 = vunpack.c.0.s8 %v412
        %v414 = vperm.slane %v406, %v413
        %v415 = vrot.slane %v376, 4
        %v416 = vsel %vm403, %v415, %v370
        %v417 = vrot.slane %v370, 4
        %v418 = vsel %vm403, %v376, %v417
        %v420 = vunpack.c.l.s4 1983009808
        %v421 = vunpack.c.0.s8 %v420
        %v422 = vperm.slane %v416, %v421
        %v424 = vunpack.c.l.s4 1983009808
        %v425 = vunpack.c.0.s8 %v424
        %v426 = vperm.slane %v418, %v425
        %v427 = vrot.slane %v385, 4
        %v428 = vsel %vm403, %v427, %v379
        %v429 = vrot.slane %v379, 4
        %v430 = vsel %vm403, %v385, %v429
        %v432 = vunpack.c.l.s4 1983009808
        %v433 = vunpack.c.0.s8 %v432
        %v434 = vperm.slane %v428, %v433
        %v436 = vunpack.c.l.s4 1983009808
        %v437 = vunpack.c.0.s8 %v436
        %v438 = vperm.slane %v430, %v437
        %v439 = vrot.slane %v388, 4
        %v440 = vsel %vm403, %v439, %v382
        %v441 = vrot.slane %v382, 4
        %v442 = vsel %vm403, %v388, %v441
        %v444 = vunpack.c.l.s4 1983009808
        %v445 = vunpack.c.0.s8 %v444
        %v446 = vperm.slane %v440, %v445
        %v448 = vunpack.c.l.s4 1983009808
        %v449 = vunpack.c.0.s8 %v448
        %v450 = vperm.slane %v442, %v449
        %v451 = vrot.slane %v422, 4
        %v452 = vsel %vm403, %v451, %v410
        %v453 = vrot.slane %v410, 4
        %v454 = vsel %vm403, %v422, %v453
        %v456 = vunpack.c.l.s4 1934713408
        %v457 = vunpack.c.0.s8 %v456
        %v458 = vperm.slane %v452, %v457
        %v460 = vunpack.c.l.s4 1934713408
        %v461 = vunpack.c.0.s8 %v460
        %v462 = vperm.slane %v454, %v461
        %v463 = vrot.slane %v426, 4
        %v464 = vsel %vm403, %v463, %v414
        %v465 = vrot.slane %v414, 4
        %v466 = vsel %vm403, %v426, %v465
        %v468 = vunpack.c.l.s4 1934713408
        %v469 = vunpack.c.0.s8 %v468
        %v470 = vperm.slane %v464, %v469
        %v472 = vunpack.c.l.s4 1934713408
        %v473 = vunpack.c.0.s8 %v472
        %v474 = vperm.slane %v466, %v473
        %v475 = vrot.slane %v446, 4
        %v476 = vsel %vm403, %v475, %v434
        %v477 = vrot.slane %v434, 4
        %v478 = vsel %vm403, %v446, %v477
        %v480 = vunpack.c.l.s4 1934713408
        %v481 = vunpack.c.0.s8 %v480
        %v482 = vperm.slane %v476, %v481
        %v484 = vunpack.c.l.s4 1934713408
        %v485 = vunpack.c.0.s8 %v484
        %v486 = vperm.slane %v478, %v485
        %v487 = vrot.slane %v450, 4
        %v488 = vsel %vm403, %v487, %v438
        %v489 = vrot.slane %v438, 4
        %v490 = vsel %vm403, %v450, %v489
        %v492 = vunpack.c.l.s4 1934713408
        %v493 = vunpack.c.0.s8 %v492
        %v494 = vperm.slane %v488, %v493
        %v496 = vunpack.c.l.s4 1934713408
        %v497 = vunpack.c.0.s8 %v496
        %v498 = vperm.slane %v490, %v497
        %v499 = vrot.slane %v482, 4
        %v500 = vsel %vm403, %v499, %v458
        %v501 = vrot.slane %v458, 4
        %v502 = vsel %vm403, %v482, %v501
        %v503 = vrot.slane %v486, 4
        %v504 = vsel %vm403, %v503, %v462
        %v505 = vrot.slane %v462, 4
        %v506 = vsel %vm403, %v486, %v505
        %v507 = vrot.slane %v494, 4
        %v508 = vsel %vm403, %v507, %v470
        %v509 = vrot.slane %v470, 4
        %v510 = vsel %vm403, %v494, %v509
        %v511 = vrot.slane %v498, 4
        %v512 = vsel %vm403, %v511, %v474
        %v513 = vrot.slane %v474, 4
        %v514 = vsel %vm403, %v498, %v513
        %v515 = vrot.slane %v397, 4
        %v516 = vsel %vm403, %v515, %v391
        %v517 = vrot.slane %v391, 4
        %v518 = vsel %vm403, %v397, %v517
        %v520 = vunpack.c.l.s4 1983009808
        %v521 = vunpack.c.0.s8 %v520
        %v522 = vperm.slane %v516, %v521
        %v524 = vunpack.c.l.s4 1983009808
        %v525 = vunpack.c.0.s8 %v524
        %v526 = vperm.slane %v518, %v525
        %v527 = vrot.slane %v400, 4
        %v528 = vsel %vm403, %v527, %v394
        %v529 = vrot.slane %v394, 4
        %v530 = vsel %vm403, %v400, %v529
        %v532 = vunpack.c.l.s4 1983009808
        %v533 = vunpack.c.0.s8 %v532
        %v534 = vperm.slane %v528, %v533
        %v536 = vunpack.c.l.s4 1983009808
        %v537 = vunpack.c.0.s8 %v536
        %v538 = vperm.slane %v530, %v537
        %v539 = vrot.slane %v534, 4
        %v540 = vsel %vm403, %v539, %v522
        %v541 = vrot.slane %v522, 4
        %v542 = vsel %vm403, %v534, %v541
        %v544 = vunpack.c.l.s4 1934713408
        %v545 = vunpack.c.0.s8 %v544
        %v546 = vperm.slane %v540, %v545
        %v548 = vunpack.c.l.s4 1934713408
        %v549 = vunpack.c.0.s8 %v548
        %v550 = vperm.slane %v542, %v549
        %v551 = vrot.slane %v538, 4
        %v552 = vsel %vm403, %v551, %v526
        %v553 = vrot.slane %v526, 4
        %v554 = vsel %vm403, %v538, %v553
        %v556 = vunpack.c.l.s4 1934713408
        %v557 = vunpack.c.0.s8 %v556
        %v558 = vperm.slane %v552, %v557
        %v560 = vunpack.c.l.s4 1934713408
        %v561 = vunpack.c.0.s8 %v560
        %v562 = vperm.slane %v554, %v561
        %v563 = vrot.slane %v546, 4
        %v564 = vsel %vm403, 0.0, %v563
        %v565 = vrot.slane %v550, 4
        %v566 = vsel %vm403, 0.0, %v565
        %v567 = vrot.slane %v558, 4
        %v568 = vsel %vm403, 0.0, %v567
        %v569 = vrot.slane %v562, 4
        %v570 = vsel %vm403, 0.0, %v569
        %v571 = vrot.slane %v504, 4
        %v572 = vsel %vm403, %v571, %v500
        %v573 = vrot.slane %v500, 4
        %v574 = vsel %vm403, %v504, %v573
        %v576 = vunpack.c.l.s4 1983009808
        %v577 = vunpack.c.0.s8 %v576
        %v578 = vperm.slane %v572, %v577
        %v580 = vunpack.c.l.s4 1983009808
        %v581 = vunpack.c.0.s8 %v580
        %v582 = vperm.slane %v574, %v581
        %v583 = vrot.slane %v506, 4
        %v584 = vsel %vm403, %v583, %v502
        %v585 = vrot.slane %v502, 4
        %v586 = vsel %vm403, %v506, %v585
        %v588 = vunpack.c.l.s4 1983009808
        %v589 = vunpack.c.0.s8 %v588
        %v590 = vperm.slane %v584, %v589
        %v592 = vunpack.c.l.s4 1983009808
        %v593 = vunpack.c.0.s8 %v592
        %v594 = vperm.slane %v586, %v593
        %v595 = vrot.slane %v512, 4
        %v596 = vsel %vm403, %v595, %v508
        %v597 = vrot.slane %v508, 4
        %v598 = vsel %vm403, %v512, %v597
        %v600 = vunpack.c.l.s4 1983009808
        %v601 = vunpack.c.0.s8 %v600
        %v602 = vperm.slane %v596, %v601
        %v604 = vunpack.c.l.s4 1983009808
        %v605 = vunpack.c.0.s8 %v604
        %v606 = vperm.slane %v598, %v605
        %v607 = vrot.slane %v514, 4
        %v608 = vsel %vm403, %v607, %v510
        %v609 = vrot.slane %v510, 4
        %v610 = vsel %vm403, %v514, %v609
        %v612 = vunpack.c.l.s4 1983009808
        %v613 = vunpack.c.0.s8 %v612
        %v614 = vperm.slane %v608, %v613
        %v616 = vunpack.c.l.s4 1983009808
        %v617 = vunpack.c.0.s8 %v616
        %v618 = vperm.slane %v610, %v617
        %v619 = vrot.slane %v590, 4
        %v620 = vsel %vm403, %v619, %v578
        %v621 = vrot.slane %v578, 4
        %v622 = vsel %vm403, %v590, %v621
        %v624 = vunpack.c.l.s4 1934713408
        %v625 = vunpack.c.0.s8 %v624
        %v626 = vperm.slane %v620, %v625
        %v628 = vunpack.c.l.s4 1934713408
        %v629 = vunpack.c.0.s8 %v628
        %v630 = vperm.slane %v622, %v629
        %v631 = vrot.slane %v594, 4
        %v632 = vsel %vm403, %v631, %v582
        %v633 = vrot.slane %v582, 4
        %v634 = vsel %vm403, %v594, %v633
        %v636 = vunpack.c.l.s4 1934713408
        %v637 = vunpack.c.0.s8 %v636
        %v638 = vperm.slane %v632, %v637
        %v640 = vunpack.c.l.s4 1934713408
        %v641 = vunpack.c.0.s8 %v640
        %v642 = vperm.slane %v634, %v641
        %v643 = vrot.slane %v614, 4
        %v644 = vsel %vm403, %v643, %v602
        %v645 = vrot.slane %v602, 4
        %v646 = vsel %vm403, %v614, %v645
        %v648 = vunpack.c.l.s4 1934713408
        %v649 = vunpack.c.0.s8 %v648
        %v650 = vperm.slane %v644, %v649
        %v652 = vunpack.c.l.s4 1934713408
        %v653 = vunpack.c.0.s8 %v652
        %v654 = vperm.slane %v646, %v653
        %v655 = vrot.slane %v618, 4
        %v656 = vsel %vm403, %v655, %v606
        %v657 = vrot.slane %v606, 4
        %v658 = vsel %vm403, %v618, %v657
        %v660 = vunpack.c.l.s4 1934713408
        %v661 = vunpack.c.0.s8 %v660
        %v662 = vperm.slane %v656, %v661
        %v664 = vunpack.c.l.s4 1934713408
        %v665 = vunpack.c.0.s8 %v664
        %v666 = vperm.slane %v658, %v665
        %v667 = vrot.slane %v650, 4
        %v668 = vsel %vm403, %v667, %v626
        %v669 = vrot.slane %v626, 4
        %v670 = vsel %vm403, %v650, %v669
        %v671 = vrot.slane %v654, 4
        %v672 = vsel %vm403, %v671, %v630
        %v673 = vrot.slane %v630, 4
        %v674 = vsel %vm403, %v654, %v673
        %v675 = vrot.slane %v662, 4
        %v676 = vsel %vm403, %v675, %v638
        %v677 = vrot.slane %v638, 4
        %v678 = vsel %vm403, %v662, %v677
        %v679 = vrot.slane %v666, 4
        %v680 = vsel %vm403, %v679, %v642
        %v681 = vrot.slane %v642, 4
        %v682 = vsel %vm403, %v666, %v681
        %v683 = vsel %vm403, %v565, %v546
        %v685 = vunpack.c.l.s4 1983009808
        %v686 = vunpack.c.0.s8 %v685
        %v687 = vperm.slane %v683, %v686
        %v688 = vrot.slane %v566, 4
        %v689 = vsel %vm403, %v688, %v564
        %v691 = vunpack.c.l.s4 1983009808
        %v692 = vunpack.c.0.s8 %v691
        %v693 = vperm.slane %v689, %v692
        %v694 = vsel %vm403, %v569, %v558
        %v696 = vunpack.c.l.s4 1983009808
        %v697 = vunpack.c.0.s8 %v696
        %v698 = vperm.slane %v694, %v697
        %v699 = vrot.slane %v570, 4
        %v700 = vsel %vm403, %v699, %v568
        %v702 = vunpack.c.l.s4 1983009808
        %v703 = vunpack.c.0.s8 %v702
        %v704 = vperm.slane %v700, %v703
        %v705 = vrot.slane %v693, 4
        %v706 = vsel %vm403, %v705, %v687
        %v707 = vrot.slane %v687, 4
        %v708 = vsel %vm403, %v693, %v707
        %v710 = vunpack.c.l.s4 1934713408
        %v711 = vunpack.c.0.s8 %v710
        %v712 = vperm.slane %v706, %v711
        %v714 = vunpack.c.l.s4 1934713408
        %v715 = vunpack.c.0.s8 %v714
        %v716 = vperm.slane %v708, %v715
        %v717 = vrot.slane %v704, 4
        %v718 = vsel %vm403, %v717, %v698
        %v719 = vrot.slane %v698, 4
        %v720 = vsel %vm403, %v704, %v719
        %v722 = vunpack.c.l.s4 1934713408
        %v723 = vunpack.c.0.s8 %v722
        %v724 = vperm.slane %v718, %v723
        %v726 = vunpack.c.l.s4 1934713408
        %v727 = vunpack.c.0.s8 %v726
        %v728 = vperm.slane %v720, %v727
        %v729 = vrot.slane %v724, 4
        %v730 = vsel %vm403, %v729, %v712
        %v731 = vrot.slane %v712, 4
        %v732 = vsel %vm403, %v724, %v731
        %v733 = vrot.slane %v728, 4
        %v734 = vsel %vm403, %v733, %v716
        %v735 = vrot.slane %v716, 4
        %v736 = vsel %vm403, %v728, %v735
        %vm737 = vcmask 64512
        %v739 = vsel %vm737, %v668, 0
        %v742 = vsel %vm737, %v676, 0
        %744 = vmatpush.xpose.msra.mxu0 0.0
        %745 = vmatpush.xpose.msra.mxu0 0.0
        %746 = vmatpush.xpose.msra.mxu0 0.0
        %747 = vmatpush.xpose.msra.mxu0 0.0
        %748 = vmatpush.xpose.msra.mxu0 0.0
        %749 = vmatpush.xpose.msra.mxu0 0.0
        %750 = vmatpush.xpose.msra.mxu0 0.0
        %751 = vmatpush.xpose.msra.mxu0 0.0
        %752 = vmatpush.xpose.msra.mxu0 0.0
        %753 = vmatpush.xpose.msra.mxu0 0.0
        %754 = vmatpush.xpose.msra.mxu0 0.0
        %755 = vmatpush.xpose.msra.mxu0 0.0
        %756 = vmatpush.xpose.msra.mxu0 0.0
        %757 = vmatpush.xpose.msra.mxu0 0.0
        %758 = vmatpush.xpose.msra.mxu0 0.0
        %759 = vmatpush.xpose.msra.mxu0 %v742
        %760 = vmatmul.f32.gmra.mxu0 %v739
        %v761 = vpop.f32.mrf.mxu0
        %v762 = vadd.f32 0.0, %v761
        %763 = vdwg.mxu0
        %v765 = vsel %vm737, %v670, 0
        %v768 = vsel %vm737, %v678, 0
        %770 = vmatpush.xpose.msra.mxu0 0.0
        %771 = vmatpush.xpose.msra.mxu0 0.0
        %772 = vmatpush.xpose.msra.mxu0 0.0
        %773 = vmatpush.xpose.msra.mxu0 0.0
        %774 = vmatpush.xpose.msra.mxu0 0.0
        %775 = vmatpush.xpose.msra.mxu0 0.0
        %776 = vmatpush.xpose.msra.mxu0 0.0
        %777 = vmatpush.xpose.msra.mxu0 0.0
        %778 = vmatpush.xpose.msra.mxu0 0.0
        %779 = vmatpush.xpose.msra.mxu0 0.0
        %780 = vmatpush.xpose.msra.mxu0 0.0
        %781 = vmatpush.xpose.msra.mxu0 0.0
        %782 = vmatpush.xpose.msra.mxu0 0.0
        %783 = vmatpush.xpose.msra.mxu0 0.0
        %784 = vmatpush.xpose.msra.mxu0 0.0
        %785 = vmatpush.xpose.msra.mxu0 %v768
        %786 = vmatmul.f32.gmra.mxu0 %v765
        %v787 = vpop.f32.mrf.mxu0
        %v788 = vadd.f32 0.0, %v787
        %789 = vdwg.mxu0
        %v791 = vsel %vm737, %v672, 0
        %v794 = vsel %vm737, %v680, 0
        %796 = vmatpush.xpose.msra.mxu0 0.0
        %797 = vmatpush.xpose.msra.mxu0 0.0
        %798 = vmatpush.xpose.msra.mxu0 0.0
        %799 = vmatpush.xpose.msra.mxu0 0.0
        %800 = vmatpush.xpose.msra.mxu0 0.0
        %801 = vmatpush.xpose.msra.mxu0 0.0
        %802 = vmatpush.xpose.msra.mxu0 0.0
        %803 = vmatpush.xpose.msra.mxu0 0.0
        %804 = vmatpush.xpose.msra.mxu0 0.0
        %805 = vmatpush.xpose.msra.mxu0 0.0
        %806 = vmatpush.xpose.msra.mxu0 0.0
        %807 = vmatpush.xpose.msra.mxu0 0.0
        %808 = vmatpush.xpose.msra.mxu0 0.0
        %809 = vmatpush.xpose.msra.mxu0 0.0
        %810 = vmatpush.xpose.msra.mxu0 0.0
        %811 = vmatpush.xpose.msra.mxu0 %v794
        %812 = vmatmul.f32.gmra.mxu0 %v791
        %v813 = vpop.f32.mrf.mxu0
        %v814 = vadd.f32 0.0, %v813
        %815 = vdwg.mxu0
        %v817 = vsel %vm737, %v674, 0
        %v820 = vsel %vm737, %v682, 0
        %822 = vmatpush.xpose.msra.mxu0 0.0
        %823 = vmatpush.xpose.msra.mxu0 0.0
        %824 = vmatpush.xpose.msra.mxu0 0.0
        %825 = vmatpush.xpose.msra.mxu0 0.0
        %826 = vmatpush.xpose.msra.mxu0 0.0
        %827 = vmatpush.xpose.msra.mxu0 0.0
        %828 = vmatpush.xpose.msra.mxu0 0.0
        %829 = vmatpush.xpose.msra.mxu0 0.0
        %830 = vmatpush.xpose.msra.mxu0 0.0
        %831 = vmatpush.xpose.msra.mxu0 0.0
        %832 = vmatpush.xpose.msra.mxu0 0.0
        %833 = vmatpush.xpose.msra.mxu0 0.0
        %834 = vmatpush.xpose.msra.mxu0 0.0
        %835 = vmatpush.xpose.msra.mxu0 0.0
        %836 = vmatpush.xpose.msra.mxu0 0.0
        %837 = vmatpush.xpose.msra.mxu0 %v820
        %838 = vmatmul.f32.gmra.mxu0 %v817
        %v839 = vpop.f32.mrf.mxu0
        %v840 = vadd.f32 0.0, %v839
        %841 = vdwg.mxu0
        %v842 = vsel %vm737, %v762, -inf
        %843 = vmax.xlane.f32.xlu0 %v842
        %v844 = vpop.xlane.xlu0 %843
        %v845 = vsel %vm737, %v788, -inf
        %846 = vmax.xlane.f32.xlu0 %v845
        %v847 = vpop.xlane.xlu0 %846
        %v848 = vsel %vm737, %v814, -inf
        %849 = vmax.xlane.f32.xlu0 %v848
        %v850 = vpop.xlane.xlu0 %849
        %v851 = vsel %vm737, %v840, -inf
        %852 = vmax.xlane.f32.xlu0 %v851
        %v853 = vpop.xlane.xlu0 %852
        %v854 = vsub.f32 %v762, %v844
        %v855 = vsub.f32 %v788, %v847
        %v856 = vsub.f32 %v814, %v850
        %v857 = vsub.f32 %v840, %v853
        %v858 = vmul.f32 %v854, 1.442695
        %v859 = vpow.pop %v858
        %v860 = vmul.f32 %v855, 1.442695
        %v861 = vpow.pop %v860
        %v862 = vmul.f32 %v856, 1.442695
        %v863 = vpow.pop %v862
        %v864 = vmul.f32 %v857, 1.442695
        %v865 = vpow.pop %v864
        %v866 = vsel %vm737, %v859, 0.0
        %867 = vadd.xlane.f32.xlu0 %v866
        %v868 = vpop.xlane.xlu0 %867
        %v869 = vsel %vm737, %v861, 0.0
        %870 = vadd.xlane.f32.xlu0 %v869
        %v871 = vpop.xlane.xlu0 %870
        %v872 = vsel %vm737, %v863, 0.0
        %873 = vadd.xlane.f32.xlu0 %v872
        %v874 = vpop.xlane.xlu0 %873
        %v875 = vsel %vm737, %v865, 0.0
        %876 = vadd.xlane.f32.xlu0 %v875
        %v877 = vpop.xlane.xlu0 %876
        %v879 = vsel %vm737, %v859, 0
        %881 = vmatpush.msra.mxu0 0.0
        %882 = vmatpush.msra.mxu0 0.0
        %883 = vmatpush.msra.mxu0 0.0
        %884 = vmatpush.msra.mxu0 0.0
        %885 = vmatpush.msra.mxu0 0.0
        %886 = vmatpush.msra.mxu0 0.0
        %887 = vmatpush.msra.mxu0 0.0
        %888 = vmatpush.msra.mxu0 0.0
        %889 = vmatpush.msra.mxu0 0.0
        %890 = vmatpush.msra.mxu0 0.0
        %891 = vmatpush.msra.mxu0 0.0
        %892 = vmatpush.msra.mxu0 0.0
        %893 = vmatpush.msra.mxu0 0.0
        %894 = vmatpush.msra.mxu0 0.0
        %895 = vmatpush.msra.mxu0 0.0
        %896 = vmatpush.msra.mxu0 %v730
        %897 = vmatmul.f32.gmra.mxu0 %v879
        %v898 = vpop.f32.mrf.mxu0
        %v899 = vadd.f32 0.0, %v898
        %900 = vdwg.mxu0
        %v902 = vsel %vm737, %v861, 0
        %904 = vmatpush.msra.mxu0 0.0
        %905 = vmatpush.msra.mxu0 0.0
        %906 = vmatpush.msra.mxu0 0.0
        %907 = vmatpush.msra.mxu0 0.0
        %908 = vmatpush.msra.mxu0 0.0
        %909 = vmatpush.msra.mxu0 0.0
        %910 = vmatpush.msra.mxu0 0.0
        %911 = vmatpush.msra.mxu0 0.0
        %912 = vmatpush.msra.mxu0 0.0
        %913 = vmatpush.msra.mxu0 0.0
        %914 = vmatpush.msra.mxu0 0.0
        %915 = vmatpush.msra.mxu0 0.0
        %916 = vmatpush.msra.mxu0 0.0
        %917 = vmatpush.msra.mxu0 0.0
        %918 = vmatpush.msra.mxu0 0.0
        %919 = vmatpush.msra.mxu0 %v732
        %920 = vmatmul.f32.gmra.mxu0 %v902
        %v921 = vpop.f32.mrf.mxu0
        %v922 = vadd.f32 0.0, %v921
        %923 = vdwg.mxu0
        %v925 = vsel %vm737, %v863, 0
        %927 = vmatpush.msra.mxu0 0.0
        %928 = vmatpush.msra.mxu0 0.0
        %929 = vmatpush.msra.mxu0 0.0
        %930 = vmatpush.msra.mxu0 0.0
        %931 = vmatpush.msra.mxu0 0.0
        %932 = vmatpush.msra.mxu0 0.0
        %933 = vmatpush.msra.mxu0 0.0
        %934 = vmatpush.msra.mxu0 0.0
        %935 = vmatpush.msra.mxu0 0.0
        %936 = vmatpush.msra.mxu0 0.0
        %937 = vmatpush.msra.mxu0 0.0
        %938 = vmatpush.msra.mxu0 0.0
        %939 = vmatpush.msra.mxu0 0.0
        %940 = vmatpush.msra.mxu0 0.0
        %941 = vmatpush.msra.mxu0 0.0
        %942 = vmatpush.msra.mxu0 %v734
        %943 = vmatmul.f32.gmra.mxu0 %v925
        %v944 = vpop.f32.mrf.mxu0
        %v945 = vadd.f32 0.0, %v944
        %946 = vdwg.mxu0
        %v948 = vsel %vm737, %v865, 0
        %950 = vmatpush.msra.mxu0 0.0
        %951 = vmatpush.msra.mxu0 0.0
        %952 = vmatpush.msra.mxu0 0.0
        %953 = vmatpush.msra.mxu0 0.0
        %954 = vmatpush.msra.mxu0 0.0
        %955 = vmatpush.msra.mxu0 0.0
        %956 = vmatpush.msra.mxu0 0.0
        %957 = vmatpush.msra.mxu0 0.0
        %958 = vmatpush.msra.mxu0 0.0
        %959 = vmatpush.msra.mxu0 0.0
        %960 = vmatpush.msra.mxu0 0.0
        %961 = vmatpush.msra.mxu0 0.0
        %962 = vmatpush.msra.mxu0 0.0
        %963 = vmatpush.msra.mxu0 0.0
        %964 = vmatpush.msra.mxu0 0.0
        %965 = vmatpush.msra.mxu0 %v736
        %966 = vmatmul.f32.gmra.mxu0 %v948
        %v967 = vpop.f32.mrf.mxu0
        %v968 = vadd.f32 0.0, %v967
        %969 = vdwg.mxu0
        %v970 = vrcp.pop %v868
        %v971 = vmul.f32 %v868, %v970
        %v972 = vsub.f32 1.0, %v971
        %v973 = vmul.f32 %v970, %v972
        %v974 = vadd.f32 %v970, %v973
        %vm975 = vweird.f32 %v868
        %vm976 = vweird.f32 %v970
        %vm977 = vmor %vm975, %vm976
        %v978 = vsel %vm977, %v970, %v974
        %v979 = vand.u32 2147483647, %v868
        %vm980 = vcmp.eq.f32.partialorder %v979, 8.507059e+37
        %v981 = vand.u32 %v868, 2147483648
        %v982 = vor.u32 1.1754944e-38, %v981
        %v983 = vsel %vm980, %v982, %v978
        %v984 = vmul.f32 %v899, %v983
        %v985 = vrcp.pop %v871
        %v986 = vmul.f32 %v871, %v985
        %v987 = vsub.f32 1.0, %v986
        %v988 = vmul.f32 %v985, %v987
        %v989 = vadd.f32 %v985, %v988
        %vm990 = vweird.f32 %v871
        %vm991 = vweird.f32 %v985
        %vm992 = vmor %vm990, %vm991
        %v993 = vsel %vm992, %v985, %v989
        %v994 = vand.u32 2147483647, %v871
        %vm995 = vcmp.eq.f32.partialorder %v994, 8.507059e+37
        %v996 = vand.u32 %v871, 2147483648
        %v997 = vor.u32 1.1754944e-38, %v996
        %v998 = vsel %vm995, %v997, %v993
        %v999 = vmul.f32 %v922, %v998
        %v1000 = vrcp.pop %v874
        %v1001 = vmul.f32 %v874, %v1000
        %v1002 = vsub.f32 1.0, %v1001
        %v1003 = vmul.f32 %v1000, %v1002
        %v1004 = vadd.f32 %v1000, %v1003
        %vm1005 = vweird.f32 %v874
        %vm1006 = vweird.f32 %v1000
        %vm1007 = vmor %vm1005, %vm1006
        %v1008 = vsel %vm1007, %v1000, %v1004
        %v1009 = vand.u32 2147483647, %v874
        %vm1010 = vcmp.eq.f32.partialorder %v1009, 8.507059e+37
        %v1011 = vand.u32 %v874, 2147483648
        %v1012 = vor.u32 1.1754944e-38, %v1011
        %v1013 = vsel %vm1010, %v1012, %v1008
        %v1014 = vmul.f32 %v945, %v1013
        %v1015 = vrcp.pop %v877
        %v1016 = vmul.f32 %v877, %v1015
        %v1017 = vsub.f32 1.0, %v1016
        %v1018 = vmul.f32 %v1015, %v1017
        %v1019 = vadd.f32 %v1015, %v1018
        %vm1020 = vweird.f32 %v877
        %vm1021 = vweird.f32 %v1015
        %vm1022 = vmor %vm1020, %vm1021
        %v1023 = vsel %vm1022, %v1015, %v1019
        %v1024 = vand.u32 2147483647, %v877
        %vm1025 = vcmp.eq.f32.partialorder %v1024, 8.507059e+37
        %v1026 = vand.u32 %v877, 2147483648
        %v1027 = vor.u32 1.1754944e-38, %v1026
        %v1028 = vsel %vm1025, %v1027, %v1023
        %v1029 = vmul.f32 %v968, %v1028
        %v1030 = vrot.slane %v1014, 4
        %v1031 = vsel %vm403, %v1030, %v984
        %v1032 = vrot.slane %v984, 4
        %v1033 = vsel %vm403, %v1014, %v1032
        %v1035 = vunpack.c.l.s4 1983009808
        %v1036 = vunpack.c.0.s8 %v1035
        %v1037 = vperm.slane %v1031, %v1036
        %v1039 = vunpack.c.l.s4 1983009808
        %v1040 = vunpack.c.0.s8 %v1039
        %v1041 = vperm.slane %v1033, %v1040
        %v1042 = vrot.slane %v1029, 4
        %v1043 = vsel %vm403, %v1042, %v999
        %v1044 = vrot.slane %v999, 4
        %v1045 = vsel %vm403, %v1029, %v1044
        %v1047 = vunpack.c.l.s4 1983009808
        %v1048 = vunpack.c.0.s8 %v1047
        %v1049 = vperm.slane %v1043, %v1048
        %v1051 = vunpack.c.l.s4 1983009808
        %v1052 = vunpack.c.0.s8 %v1051
        %v1053 = vperm.slane %v1045, %v1052
        %v1054 = vrot.slane %v1049, 4
        %v1055 = vsel %vm403, %v1054, %v1037
        %v1056 = vrot.slane %v1037, 4
        %v1057 = vsel %vm403, %v1049, %v1056
        %v1059 = vunpack.c.l.s4 1934713408
        %v1060 = vunpack.c.0.s8 %v1059
        %v1061 = vperm.slane %v1055, %v1060
        %v1063 = vunpack.c.l.s4 1934713408
        %v1064 = vunpack.c.0.s8 %v1063
        %v1065 = vperm.slane %v1057, %v1064
        %v1066 = vrot.slane %v1053, 4
        %v1067 = vsel %vm403, %v1066, %v1041
        %v1068 = vrot.slane %v1041, 4
        %v1069 = vsel %vm403, %v1053, %v1068
        %v1071 = vunpack.c.l.s4 1934713408
        %v1072 = vunpack.c.0.s8 %v1071
        %v1073 = vperm.slane %v1067, %v1072
        %v1075 = vunpack.c.l.s4 1934713408
        %v1076 = vunpack.c.0.s8 %v1075
        %v1077 = vperm.slane %v1069, %v1076
        %v1078 = vrot.slane %v1061, 4
        %v1079 = vsel %vm403, 0.0, %v1078
        %v1080 = vrot.slane %v1065, 4
        %v1081 = vsel %vm403, 0.0, %v1080
        %v1082 = vrot.slane %v1073, 4
        %v1083 = vsel %vm403, 0.0, %v1082
        %v1084 = vrot.slane %v1077, 4
        %v1085 = vsel %vm403, 0.0, %v1084
        %v1086 = vsel %vm403, %v1080, %v1061
        %v1088 = vunpack.c.l.s4 1983009808
        %v1089 = vunpack.c.0.s8 %v1088
        %v1090 = vperm.slane %v1086, %v1089
        %v1091 = vrot.slane %v1081, 4
        %v1092 = vsel %vm403, %v1091, %v1079
        %v1094 = vunpack.c.l.s4 1983009808
        %v1095 = vunpack.c.0.s8 %v1094
        %v1096 = vperm.slane %v1092, %v1095
        %v1097 = vsel %vm403, %v1084, %v1073
        %v1099 = vunpack.c.l.s4 1983009808
        %v1100 = vunpack.c.0.s8 %v1099
        %v1101 = vperm.slane %v1097, %v1100
        %v1102 = vrot.slane %v1085, 4
        %v1103 = vsel %vm403, %v1102, %v1083
        %v1105 = vunpack.c.l.s4 1983009808
        %v1106 = vunpack.c.0.s8 %v1105
        %v1107 = vperm.slane %v1103, %v1106
        %v1108 = vrot.slane %v1096, 4
        %v1109 = vsel %vm403, %v1108, %v1090
        %v1110 = vrot.slane %v1090, 4
        %v1111 = vsel %vm403, %v1096, %v1110
        %v1113 = vunpack.c.l.s4 1934713408
        %v1114 = vunpack.c.0.s8 %v1113
        %v1115 = vperm.slane %v1109, %v1114
        %v1117 = vunpack.c.l.s4 1934713408
        %v1118 = vunpack.c.0.s8 %v1117
        %v1119 = vperm.slane %v1111, %v1118
        %v1120 = vrot.slane %v1107, 4
        %v1121 = vsel %vm403, %v1120, %v1101
        %v1122 = vrot.slane %v1101, 4
        %v1123 = vsel %vm403, %v1107, %v1122
        %v1125 = vunpack.c.l.s4 1934713408
        %v1126 = vunpack.c.0.s8 %v1125
        %v1127 = vperm.slane %v1121, %v1126
        %v1129 = vunpack.c.l.s4 1934713408
        %v1130 = vunpack.c.0.s8 %v1129
        %v1131 = vperm.slane %v1123, %v1130
        %v1132 = vrot.slane %v1127, 4
        %v1133 = vsel %vm403, %v1132, %v1115
        %v1134 = vrot.slane %v1115, 4
        %v1135 = vsel %vm403, %v1127, %v1134
        %v1136 = vrot.slane %v1131, 4
        %v1137 = vsel %vm403, %v1136, %v1119
        %v1138 = vrot.slane %v1119, 4
        %v1139 = vsel %vm403, %v1131, %v1138
        %1141 = vrot.lane.b32.xlu0 %v1135, 8
        %v1142 = vpop.permute.xlu0 %1141
        %1145 = vrot.lane.b32.xlu0 %v1137, 16
        %v1146 = vpop.permute.xlu0 %1145
        %1149 = vrot.lane.b32.xlu0 %v1139, 24
        %v1150 = vpop.permute.xlu0 %1149
        %v1152 = vsel %vm737, %v1133, %v1142
        %vm1153 = vcmask 130048
        %v1154 = vsel %vm1153, %v1152, %v1146
        %vm1155 = vcmask 195584
        %v1156 = vsel %vm1155, %v1154, %v1150
        %v1157 = vld [vmem:[%s3] sm:$0xff]
        %v1158 = vld [vmem:[%s3 + $0x8] sm:$0xff]
        %v1159 = vld [vmem:[%s3 + $0x10] sm:$0xff]
        %v1160 = vld [vmem:[%s3 + $0x18] sm:$0xff]
        %v1161 = vperm.slane %v302, 4
        %v1163 = vsel %vm303, %v1156, 0
        %1165 = vmatpush.msra.mxu0 0.0
        %1166 = vmatpush.msra.mxu0 0.0
        %1167 = vmatpush.msra.mxu0 0.0
        %1168 = vmatpush.msra.mxu0 0.0
        %1169 = vmatpush.msra.mxu0 0.0
        %1170 = vmatpush.msra.mxu0 0.0
        %1171 = vmatpush.msra.mxu0 0.0
        %1172 = vmatpush.msra.mxu0 0.0
        %1173 = vmatpush.msra.mxu0 0.0
        %1174 = vmatpush.msra.mxu0 0.0
        %1175 = vmatpush.msra.mxu0 0.0
        %1176 = vmatpush.msra.mxu0 0.0
        %1177 = vmatpush.msra.mxu0 %v1160
        %1178 = vmatpush.msra.mxu0 %v1159
        %1179 = vmatpush.msra.mxu0 %v1158
        %1180 = vmatpush.msra.mxu0 %v1157
        %1181 = vmatmul.f32.gmra.mxu0 %v1163
        %v1182 = vpop.f32.mrf.mxu0
        %v1183 = vadd.f32 %v1161, %v1182
        %1184 = vdwg.mxu0
        %v1185 = vadd.f32 %v301, %v1183
        %v1186 = vsel %vm303, %v1185, 0.0
        %1187 = vadd.xlane.f32.xlu0 %v1186
        %v1188 = vpop.xlane.xlu0 %1187
        %v1189 = vmul.f32 %v1188, %v313
        %v1190 = vsub.f32 %v1185, %v1189
        %v1191 = vmul.f32 %v1190, %v1190
        %v1192 = vsel %vm303, %v1191, 0.0
        %1193 = vadd.xlane.f32.xlu0 %v1192
        %v1194 = vpop.xlane.xlu0 %1193
        %v1195 = vmul.f32 %v1194, %v313
        %v1196 = vadd.f32 %v1195, 1e-05
        %v1197 = vrsqrt.pop %v1196
        %v1198 = vmul.f32 %v1197, %v1196
        %v1199 = vmul.f32 %v1198, %v1197
        %v1200 = vmul.f32 0.5, %v1199
        %v1201 = vsub.f32 1.5, %v1200
        %v1202 = vmul.f32 %v1197, %v1201
        %vm1203 = vweird.f32 %v1196
        %vm1204 = vweird.f32 %v1197
        %vm1205 = vmor %vm1203, %vm1204
        %v1206 = vsel %vm1205, %v1197, %v1202
        %v1207 = vmul.f32 %v1190, %v1206
        %v1208 = vperm.slane %v302, 2
        %v1209 = vmul.f32 %v1207, %v1208
        %v1210 = vperm.slane %v302, 3
        %v1211 = vadd.f32 %v1209, %v1210
        %v1212 = vld [vmem:[%s4] sm:$0xff]
        %v1213 = vld [vmem:[%s4 + $0x8] sm:$0xff]
        %v1214 = vld [vmem:[%s4 + $0x10] sm:$0xff]
        %v1215 = vld [vmem:[%s4 + $0x18] sm:$0xff]
        %v1216 = vld [vmem:[%s5] sm:$0x1]
        %v1218 = vperm.slane %v1216, 0
        %v1221 = vsel %vm303, %v1211, 0
        %1223 = vmatpush.msra.mxu0 0.0
        %1224 = vmatpush.msra.mxu0 0.0
        %1225 = vmatpush.msra.mxu0 0.0
        %1226 = vmatpush.msra.mxu0 0.0
        %1227 = vmatpush.msra.mxu0 0.0
        %1228 = vmatpush.msra.mxu0 0.0
        %1229 = vmatpush.msra.mxu0 0.0
        %1230 = vmatpush.msra.mxu0 0.0
        %1231 = vmatpush.msra.mxu0 0.0
        %1232 = vmatpush.msra.mxu0 0.0
        %1233 = vmatpush.msra.mxu0 0.0
        %1234 = vmatpush.msra.mxu0 0.0
        %1235 = vmatpush.msra.mxu0 %v1215
        %1236 = vmatpush.msra.mxu0 %v1214
        %1237 = vmatpush.msra.mxu0 %v1213
        %1238 = vmatpush.msra.mxu0 %v1212
        %1239 = vmatmul.f32.gmra.mxu0 %v1221
        %v1240 = vpop.f32.mrf.mxu0
        %v1241 = vadd.f32 %v1218, %v1240
        %1242 = vdwg.mxu0
        %v1243 = vmax.f32 %v1241, 0.0
        %v1244 = vld [vmem:[%s6] sm:$0xff]
        %v1245 = vld [vmem:[%s6 + $0x8] sm:$0xff]
        %v1246 = vld [vmem:[%s6 + $0x10] sm:$0xff]
        %v1247 = vld [vmem:[%s6 + $0x18] sm:$0xff]
        %v1248 = vld [vmem:[%s6 + $0x20] sm:$0xff]
        %v1249 = vld [vmem:[%s6 + $0x28] sm:$0xff]
        %v1250 = vld [vmem:[%s6 + $0x30] sm:$0xff]
        %v1251 = vld [vmem:[%s6 + $0x38] sm:$0xff]
        %v1252 = vld [vmem:[%s6 + $0x40] sm:$0xff]
        %v1253 = vld [vmem:[%s6 + $0x48] sm:$0xff]
        %v1254 = vld [vmem:[%s6 + $0x50] sm:$0xff]
        %v1255 = vld [vmem:[%s6 + $0x58] sm:$0xff]
        %v1256 = vld [vmem:[%s6 + $0x60] sm:$0xff]
        %v1257 = vld [vmem:[%s6 + $0x68] sm:$0xff]
        %v1258 = vld [vmem:[%s6 + $0x70] sm:$0xff]
        %v1259 = vld [vmem:[%s6 + $0x78] sm:$0xff]
        %v1260 = vperm.slane %v302, 5
        %1261 = vmatpush.msra.mxu0 %v1259
        %1262 = vmatpush.msra.mxu0 %v1258
        %1263 = vmatpush.msra.mxu0 %v1257
        %1264 = vmatpush.msra.mxu0 %v1256
        %1265 = vmatpush.msra.mxu0 %v1255
        %1266 = vmatpush.msra.mxu0 %v1254
        %1267 = vmatpush.msra.mxu0 %v1253
        %1268 = vmatpush.msra.mxu0 %v1252
        %1269 = vmatpush.msra.mxu0 %v1251
        %1270 = vmatpush.msra.mxu0 %v1250
        %1271 = vmatpush.msra.mxu0 %v1249
        %1272 = vmatpush.msra.mxu0 %v1248
        %1273 = vmatpush.msra.mxu0 %v1247
        %1274 = vmatpush.msra.mxu0 %v1246
        %1275 = vmatpush.msra.mxu0 %v1245
        %1276 = vmatpush.msra.mxu0 %v1244
        %1277 = vmatmul.f32.gmra.mxu0 %v1243
        %v1278 = vpop.f32.mrf.mxu0
        %v1279 = vadd.f32 %v1260, %v1278
        %1280 = vdwg.mxu0
        %v1281 = vadd.f32 %v1185, %v1279
        %1282 = vst.msk [vmem:[%s296] sm:$0xff] %vm303, %v1281
        %s1283 = sand.u32 %s203, 1
        %s1284 = scalar_lea.sflag [#allocation3], %s1283
        %s1285 = sand.u32 %s203, 1
        %s1286 = smul.addr %s1285, 8
        %s1287 = scalar_lea.vmem [#allocation2], %s1286
        // Predicated region
        $region53: #{tpu_custom_call.1} parent=51 // pred_check
          %p1288 = pneg %p213
        $region54: #{tpu_custom_call.1} parent=51 // pred_check_branch
          %1290 = sbr.rel (%p1288) target = $region56
        $region55: #{tpu_custom_call.1} parent=51 // pred_region
          %1292 = vsyncadd %s1284, 0
          %s1293 = smul.addr %s22, 8
          %s1294 = scalar_lea.hbm %s8, %s1293
          %s1296 = sshll.u32 %s1287, 4
          %s1297 = int_to_ptr.vmem [resolvable:$true] %s1296
          %s1298 = sshll.u32 %s1294, 4
          %s1299 = int_to_ptr.hbm [resolvable:$true] %s1298
          %1301 = dma.vmem_to_hbm [thread:$0]  %s1297, 128, %s1299, %s1284
        $region56: #{tpu_custom_call.1} parent=51 // pred_fallthru
          _
      $region52: #{tpu_custom_call.1} parent=5 // pred_fallthru
        _
      %p1302 = scmp.le.s32.totalorder 2, %s17
      // Predicated region
      $region57: #{tpu_custom_call.1} parent=5 // pred_check
        %p1303 = pneg %p1302
      $region58: #{tpu_custom_call.1} parent=5 // pred_check_branch
        %1305 = sbr.rel (%p1303) target = $region60
      $region59: #{tpu_custom_call.1} parent=5 // pred_region
        %s1306 = ssub.s32 %s17, 2
        // Predicated region
        $region61: #{tpu_custom_call.1} parent=59 // pred_check
          %p1307 = pneg %p219
        $region62: #{tpu_custom_call.1} parent=59 // pred_check_branch
          %1309 = sbr.rel (%p1307) target = $region64
        $region63: #{tpu_custom_call.1} parent=59 // pred_region
          %s1310 = sand.u32 %s204, 1
          %s1311 = scalar_lea.sflag [#allocation3], %s1310
          %s1312 = sand.u32 %s204, 1
          %s1313 = smul.addr %s1312, 8
          %s1314 = scalar_lea.vmem [#allocation2], %s1313
          %1316 = dma.done %s1311, 128
        $region64: #{tpu_custom_call.1} parent=59 // pred_fallthru
          _
      $region60: #{tpu_custom_call.1} parent=5 // pred_fallthru
        _
    $region6: #{tpu_custom_call.1} parent=1 // loop_footer
      %s21 = sadd.s32 1, %s17
    $region7: #{tpu_custom_call.1} parent=1 // loop_footer_branch
      %16 = sbr.rel target = $region3
    $region8: #{tpu_custom_call.1} parent=1 // loop_exit
      _
    %1317 = vsyncpa [#allocation3], 1
    %s1318 = scalar_lea.sflag [#allocation3], 1
    %1319 = vsyncpa %s1318, 1

</llo_original>
